<compile_context>
chip_gen: v5e
topology: v5e:2x2
jax: 0.10.0
libtpu: 0.0.40
codegen_flags: <defaults>
</compile_context>

<pallas_src>
import jax
import jax.numpy as jnp
import numpy as np
from jax.experimental import pallas as pl
from jax.experimental.pallas import tpu as pltpu

_MIB = 1024 * 1024


def _round_up(x, m):
    return ((x + m - 1) // m) * m


def _vmem_capacity_bytes():
    """Physical VMEM per TensorCore (bytes); conservative fallback if unknown."""
    try:
        return int(pltpu.get_tpu_info().vmem_capacity_bytes)
    except Exception:
        return 64 * _MIB  # v7x-safe default (also implies the 2-TC heuristic)


# ---------------------------------------------------------------------------
# Fused single-pass kernel: pool + bottleneck + softmax + blend.
# ---------------------------------------------------------------------------
def _make_fused_kernel(inv_hw):
    def kernel(x1_ref, x2_ref, w1t_ref, scale_ref, shift_ref, w2t_ref, o_ref):
        x1 = x1_ref[...].astype(jnp.float32)                       # (Nb, C, HW)
        x2 = x2_ref[...].astype(jnp.float32)

        # Global average pool, batched over Nb.  s = x1 + x2 is never
        # materialized over HW; only the (Nb, C) channel sums are added.
        u = (jnp.sum(x1, axis=-1) + jnp.sum(x2, axis=-1)) * inv_hw  # (Nb, C)

        # Bottleneck: 1x1 conv -> folded BN(eval) -> ReLU -> 1x1 conv.
        # Tiny MXU matmuls -> HIGHEST precision is free and matches the f32
        # reference.
        z = jnp.dot(u, w1t_ref[...], precision=jax.lax.Precision.HIGHEST,
                    preferred_element_type=jnp.float32)             # (Nb, Ch)
        z = jnp.maximum(z * scale_ref[...] + shift_ref[...], 0.0)
        v = jnp.dot(z, w2t_ref[...], precision=jax.lax.Precision.HIGHEST,
                    preferred_element_type=jnp.float32)             # (Nb, C)

        # Channel softmax (per batch row).  Garbage rows of a partial last
        # batch block stay in their own rows and are discarded by the masked
        # output store.
        m = jnp.max(v, axis=-1, keepdims=True)
        e = jnp.exp(v - m)
        a = e / jnp.sum(e, axis=-1, keepdims=True)                  # (Nb, C)

        # Blend: out = x2 + a * (x1 - x2) (one multiply fewer than
        # x1*a + x2*(1-a)); fully batched, no per-batch unroll.
        o_ref[...] = (x2 + a[:, :, None] * (x1 - x2)).astype(o_ref.dtype)

    return kernel


# ---------------------------------------------------------------------------
# Two-pass fallback: pass 1 pools spatial chunks -> channel attention (N,C,1),
# pass 2 streams the blend.  Used when one batch row's (C, HW) tile does not
# fit the VMEM streaming budget (large C*H*W, v7x 64 MiB VMEM).
# ---------------------------------------------------------------------------
def _make_pool_kernel(sc, hw, inv_hw):
    ragged = (hw % sc) != 0

    def kernel(x1_ref, x2_ref, w1_ref, scale_ref, shift_ref, w2_ref,
               a_ref, acc_ref):
        s = pl.program_id(1)

        @pl.when(s == 0)
        def _():
            acc_ref[...] = jnp.zeros_like(acc_ref)

        x1 = x1_ref[0].astype(jnp.float32)                          # (C, Sc)
        x2 = x2_ref[0].astype(jnp.float32)
        if ragged:
            # Last spatial chunk runs past HW: mask the OOB lanes out of the sums.
            valid = hw - s * sc
            lane = jax.lax.broadcasted_iota(jnp.int32, (1, sc), 1)
            keep = lane < valid
            x1 = jnp.where(keep, x1, 0.0)
            x2 = jnp.where(keep, x2, 0.0)
        acc_ref[...] += (jnp.sum(x1, axis=-1, keepdims=True)
                         + jnp.sum(x2, axis=-1, keepdims=True))     # (C, 1)

        @pl.when(s == pl.num_programs(1) - 1)
        def _():
            u = acc_ref[...] * inv_hw                               # (C, 1)
            z = jnp.dot(w1_ref[...], u, precision=jax.lax.Precision.HIGHEST,
                        preferred_element_type=jnp.float32)         # (Ch, 1)
            z = jnp.maximum(z * scale_ref[...] + shift_ref[...], 0.0)
            v = jnp.dot(w2_ref[...], z, precision=jax.lax.Precision.HIGHEST,
                        preferred_element_type=jnp.float32)         # (C, 1)
            m = jnp.max(v, axis=0, keepdims=True)
            e = jnp.exp(v - m)
            a = e / jnp.sum(e, axis=0, keepdims=True)               # (C, 1)
            a_ref[...] = a[None, :, :].astype(a_ref.dtype)          # (1, C, 1)

    return kernel


def _blend_kernel(x1_ref, x2_ref, a_ref, o_ref):
    x1 = x1_ref[...].astype(jnp.float32)                            # (1, C, Sc)
    x2 = x2_ref[...].astype(jnp.float32)
    o_ref[...] = (x2 + a_ref[...] * (x1 - x2)).astype(o_ref.dtype)


# ---------------------------------------------------------------------------
# Wrapper.
# ---------------------------------------------------------------------------
def sk_module(x1, x2, w1, w2, gamma, beta, running_mean, running_var,
              eps=1e-5, *, vmem_budget_bytes=None, max_batch_block=None):
    """Fused SK_Module forward.

    x1, x2: (N, C, H, W); w1: (C//2, C) 1x1-conv weight; w2: (C, C//2).
    BatchNorm2d uses eval-mode (running-stats) semantics.
    `vmem_budget_bytes` / `max_batch_block` are testing overrides.
    """
    N, C, H, W = x1.shape
    HW = H * W
    Ch = C // 2
    inv_hw = 1.0 / float(HW)

    # Free reshape (trailing contiguous dims merge); no padding copies.
    x1f = x1.reshape(N, C, HW)
    x2f = x2.reshape(N, C, HW)

    w1 = jnp.asarray(w1, jnp.float32)
    w2 = jnp.asarray(w2, jnp.float32)
    inv_std = 1.0 / jnp.sqrt(jnp.asarray(running_var, jnp.float32) + eps)
    scale_v = jnp.asarray(gamma, jnp.float32) * inv_std                   # (Ch,)
    shift_v = (jnp.asarray(beta, jnp.float32)
               - jnp.asarray(running_mean, jnp.float32) * scale_v)        # (Ch,)

    # --- Generation-aware VMEM budget / tiling. ---------------------------
    vmem_cap = _vmem_capacity_bytes()
    ws_budget = (vmem_cap * 3) // 4 if vmem_budget_bytes is None else int(vmem_budget_bytes)
    two_tc = vmem_cap <= 64 * _MIB      # v7x: 64 MiB VMEM per TC, 2 TCs/chip

    c_v = _round_up(C, 8)               # VMEM footprint uses padded dims
    hw_v = _round_up(HW, 128)
    bytes_per_row = c_v * hw_v * 4      # one f32 tensor, one batch row
    streams = 3 * 2                     # x1, x2, out; double-buffered

    def vmem_limit(streamed_bytes):
        # +4 MiB for params/accumulators, >= 32 MiB floor, 12 MiB headroom
        # below physical VMEM (spills / compiler scratch).
        return int(min(max(streamed_bytes + 4 * _MIB, 32 * _MIB),
                       vmem_cap - 12 * _MIB))

    if streams * bytes_per_row <= ws_budget:
        # ------------------- single fused pass -------------------
        nb = max(1, ws_budget // (streams * bytes_per_row))
        if max_batch_block is not None:
            nb = min(nb, int(max_batch_block))
        if two_tc and N >= 2:
            nb = min(nb, pl.cdiv(N, 2))   # keep >= 2 grid steps on 2-TC chips
        nb = int(max(1, min(nb, N)))

        xspec = pl.BlockSpec((nb, C, HW), lambda g: (g, 0, 0))

        def full(shape):
            return pl.BlockSpec(shape, lambda g: (0, 0))

        out = pl.pallas_call(
            _make_fused_kernel(inv_hw),
            out_shape=jax.ShapeDtypeStruct((N, C, HW), x1.dtype),
            grid_spec=pltpu.PrefetchScalarGridSpec(
                num_scalar_prefetch=0,
                grid=(pl.cdiv(N, nb),),   # partial last block is OOB-masked
                in_specs=[xspec, xspec,
                          full((C, Ch)),  # w1.T
                          full((1, Ch)),  # BN scale
                          full((1, Ch)),  # BN shift
                          full((Ch, C))],  # w2.T
                out_specs=xspec,
            ),
            compiler_params=pltpu.CompilerParams(
                dimension_semantics=("parallel",),
                vmem_limit_bytes=vmem_limit(streams * nb * bytes_per_row),
            ),
        )(x1f, x2f, w1.T, scale_v.reshape(1, Ch), shift_v.reshape(1, Ch), w2.T)
        return out.reshape(N, C, H, W)

    # ------------------- two-pass spatial-tiling fallback -------------------
    sc = int(ws_budget // (streams * c_v * 4))
    sc = max(128, (sc // 128) * 128)      # lane-dense spatial chunks
    if sc >= HW:
        sc = HW
    n_s = pl.cdiv(HW, sc)
    sc_v = _round_up(sc, 128)

    xchunk = pl.BlockSpec((1, C, sc), lambda b, s: (b, 0, s))
    aspec = pl.BlockSpec((1, C, 1), lambda b, s: (b, 0, 0))

    def full2(shape):
        return pl.BlockSpec(shape, lambda b, s: (0, 0))

    # Pass 1: pooled channel attention a (N, C, 1); spatial axis is the
    # reduction ('arbitrary', last in the grid).
    a = pl.pallas_call(
        _make_pool_kernel(sc, HW, inv_hw),
        out_shape=jax.ShapeDtypeStruct((N, C, 1), jnp.float32),
        grid_spec=pltpu.PrefetchScalarGridSpec(
            num_scalar_prefetch=0,
            grid=(N, n_s),
            in_specs=[xchunk, xchunk,
                      full2((Ch, C)),     # w1
                      full2((Ch, 1)),     # BN scale
                      full2((Ch, 1)),     # BN shift
                      full2((C, Ch))],    # w2
            out_specs=aspec,
            scratch_shapes=[pltpu.VMEM((C, 1), jnp.float32)],
        ),
        compiler_params=pltpu.CompilerParams(
            dimension_semantics=("parallel", "arbitrary"),
            vmem_limit_bytes=vmem_limit(2 * 2 * c_v * sc_v * 4),
        ),
    )(x1f, x2f, w1, scale_v.reshape(Ch, 1), shift_v.reshape(Ch, 1), w2)

    # Pass 2: streamed blend out = x2 + a * (x1 - x2).
    out = pl.pallas_call(
        _blend_kernel,
        out_shape=jax.ShapeDtypeStruct((N, C, HW), x1.dtype),
        grid_spec=pltpu.PrefetchScalarGridSpec(
            num_scalar_prefetch=0,
            grid=(N, n_s),
            in_specs=[xchunk, xchunk, aspec],
            out_specs=xchunk,
        ),
        compiler_params=pltpu.CompilerParams(
            dimension_semantics=("parallel", "parallel"),
            vmem_limit_bytes=vmem_limit(3 * 2 * c_v * sc_v * 4),
        ),
    )(x1f, x2f, a)
    return out.reshape(N, C, H, W)


# ---------------------------------------------------------------------------
# Pure-JAX reference and tests.
# ---------------------------------------------------------------------------
def sk_reference(x1, x2, w1, w2, gamma, beta, rm, rv, eps=1e-5):
    """Pure-JAX reference of the PyTorch SK_Module forward (eval-mode BN)."""
    u = jnp.mean(x1 + x2, axis=(2, 3))                                        # (N, C)
    z = jnp.einsum("nc,oc->no", u, w1, precision=jax.lax.Precision.HIGHEST)
    z = (z - rm[None, :]) / jnp.sqrt(rv[None, :] + eps) * gamma[None, :] + beta[None, :]
    z = jnp.maximum(z, 0.0)
    v = jnp.einsum("nh,oh->no", z, w2, precision=jax.lax.Precision.HIGHEST)
    a = jax.nn.softmax(v, axis=1)[:, :, None, None]                           # (N, C, 1, 1)
    return x1 * a + x2 * (1.0 - a)


def _run_case(key, N, C, H, W, **kwargs):
    Ch = C // 2
    k1, k2, k3, k4, k5, k6 = jax.random.split(key, 6)

    x1 = jax.random.normal(k1, (N, C, H, W), jnp.float32)
    x2 = jax.random.normal(k2, (N, C, H, W), jnp.float32)

    # Deterministic synthetic parameters (Conv2d 1x1 weights + BN stats).
    w1 = jax.random.normal(k3, (Ch, C), jnp.float32) * (1.0 / jnp.sqrt(C))
    w2 = jax.random.normal(k4, (C, Ch), jnp.float32) * (1.0 / jnp.sqrt(Ch))
    gamma = jnp.ones((Ch,), jnp.float32)
    beta = jnp.zeros((Ch,), jnp.float32)
    running_mean = jax.random.normal(k5, (Ch,), jnp.float32) * 0.1
    running_var = jnp.abs(jax.random.normal(k6, (Ch,), jnp.float32)) * 0.1 + 1.0

    out = sk_module(x1, x2, w1, w2, gamma, beta, running_mean, running_var, **kwargs)
    out = jax.block_until_ready(out)

    ref = sk_reference(x1, x2, w1, w2, gamma, beta, running_mean, running_var)
    np.testing.assert_allclose(np.asarray(out), np.asarray(ref), rtol=1e-3, atol=1e-3)


if __name__ == "__main__":
    root = jax.random.PRNGKey(0)
    key_a, key_b, key_c = jax.random.split(root, 3)

    # Case 1: lane-aligned HW (256); fused single-pass path.
    _run_case(key_a, N=4, C=16, H=16, W=16)
    # Case 2: non-128-multiple HW and a forced partial batch block (N=3, Nb=2):
    # exercises Pallas OOB masking of the last batch block (garbage rows flow
    # through the softmax but stay in their own columns and are discarded).
    _run_case(key_b, N=3, C=8, H=10, W=10, max_batch_block=2)
    # Case 3: forced-small VMEM budget -> two-pass spatial-tiling fallback
    # (ragged last spatial chunk masked out of the pooled sums).
    _run_case(key_c, N=3, C=8, H=20, W=20, vmem_budget_bytes=64 * 1024)

    print("KERNEL_OK")
</pallas_src>

<mosaic_0001>
module attributes {stable_mosaic.version = 11 : i64} {
  func.func @kernel(%arg0: i32, %arg1: memref<2x16x256xf32, #tpu.memory_space<vmem>>, %arg2: memref<2x16x256xf32, #tpu.memory_space<vmem>>, %arg3: memref<16x8xf32, #tpu.memory_space<vmem>>, %arg4: memref<1x8xf32, #tpu.memory_space<vmem>>, %arg5: memref<1x8xf32, #tpu.memory_space<vmem>>, %arg6: memref<8x16xf32, #tpu.memory_space<vmem>>, %arg7: memref<2x16x256xf32, #tpu.memory_space<vmem>>) attributes {dimension_semantics = [#tpu.dimension_semantics<parallel>], iteration_bounds = array<i64: 2>, scalar_prefetch = 0 : i64, scratch_operands = 0 : i64, tpu.core_type = #tpu.core_type<tc>, window_params = [{transform_indices = @transform_0, window_bounds = array<i64: 2, 16, 256>}, {transform_indices = @transform_1, window_bounds = array<i64: 2, 16, 256>}, {pipeline_mode = #tpu.pipeline_mode<synchronous>, transform_indices = @transform_2, window_bounds = array<i64: 16, 8>}, {pipeline_mode = #tpu.pipeline_mode<synchronous>, transform_indices = @transform_3, window_bounds = array<i64: 1, 8>}, {pipeline_mode = #tpu.pipeline_mode<synchronous>, transform_indices = @transform_4, window_bounds = array<i64: 1, 8>}, {pipeline_mode = #tpu.pipeline_mode<synchronous>, transform_indices = @transform_5, window_bounds = array<i64: 8, 16>}, {transform_indices = @transform_6, window_bounds = array<i64: 2, 16, 256>}]} {
    %c0 = arith.constant 0 : index
    %c0_0 = arith.constant 0 : index
    %c0_1 = arith.constant 0 : index
    %0 = vector.load %arg1[%c0, %c0_0, %c0_1] : memref<2x16x256xf32, #tpu.memory_space<vmem>>, vector<2x16x256xf32>
    %c0_2 = arith.constant 0 : index
    %c0_3 = arith.constant 0 : index
    %c0_4 = arith.constant 0 : index
    %1 = vector.load %arg2[%c0_2, %c0_3, %c0_4] : memref<2x16x256xf32, #tpu.memory_space<vmem>>, vector<2x16x256xf32>
    %cst = arith.constant dense<0.000000e+00> : vector<2x16xf32>
    %2 = vector.multi_reduction <add>, %0, %cst [2] : vector<2x16x256xf32> to vector<2x16xf32>
    %cst_5 = arith.constant dense<0.000000e+00> : vector<2x16xf32>
    %3 = vector.multi_reduction <add>, %1, %cst_5 [2] : vector<2x16x256xf32> to vector<2x16xf32>
    %4 = arith.addf %2, %3 : vector<2x16xf32>
    %cst_6 = arith.constant 3.906250e-03 : f32
    %5 = vector.broadcast %cst_6 : f32 to vector<2x16xf32>
    %6 = arith.mulf %4, %5 : vector<2x16xf32>
    %c0_7 = arith.constant 0 : index
    %c0_8 = arith.constant 0 : index
    %7 = vector.load %arg3[%c0_7, %c0_8] : memref<16x8xf32, #tpu.memory_space<vmem>>, vector<16x8xf32>
    %cst_9 = arith.constant dense<0.000000e+00> : vector<2x8xf32>
    %8 = tpu.matmul %6, %7, %cst_9 {dimension_numbers = #tpu.dot_dimension_numbers<[1], [0], [0], [1], [0, 0, 1, 1], [], []>, precision = #tpu.contract_precision<fp32>} : vector<2x16xf32>, vector<16x8xf32>, vector<2x8xf32> -> vector<2x8xf32>
    %c0_10 = arith.constant 0 : index
    %c0_11 = arith.constant 0 : index
    %9 = vector.load %arg4[%c0_10, %c0_11] : memref<1x8xf32, #tpu.memory_space<vmem>>, vector<1x8xf32>
    %10 = vector.broadcast %9 : vector<1x8xf32> to vector<2x8xf32>
    %11 = arith.mulf %8, %10 : vector<2x8xf32>
    %c0_12 = arith.constant 0 : index
    %c0_13 = arith.constant 0 : index
    %12 = vector.load %arg5[%c0_12, %c0_13] : memref<1x8xf32, #tpu.memory_space<vmem>>, vector<1x8xf32>
    %13 = vector.broadcast %12 : vector<1x8xf32> to vector<2x8xf32>
    %14 = arith.addf %11, %13 : vector<2x8xf32>
    %cst_14 = arith.constant 0.000000e+00 : f32
    %15 = vector.broadcast %cst_14 : f32 to vector<2x8xf32>
    %16 = arith.maximumf %14, %15 : vector<2x8xf32>
    %c0_15 = arith.constant 0 : index
    %c0_16 = arith.constant 0 : index
    %17 = vector.load %arg6[%c0_15, %c0_16] : memref<8x16xf32, #tpu.memory_space<vmem>>, vector<8x16xf32>
    %cst_17 = arith.constant dense<0.000000e+00> : vector<2x16xf32>
    %18 = tpu.matmul %16, %17, %cst_17 {dimension_numbers = #tpu.dot_dimension_numbers<[1], [0], [0], [1], [0, 0, 1, 1], [], []>, precision = #tpu.contract_precision<fp32>} : vector<2x8xf32>, vector<8x16xf32>, vector<2x16xf32> -> vector<2x16xf32>
    %cst_18 = arith.constant dense<0xFF800000> : vector<2xf32>
    %19 = vector.multi_reduction <maximumf>, %18, %cst_18 [1] : vector<2x16xf32> to vector<2xf32>
    %20 = vector.shape_cast %19 : vector<2xf32> to vector<2x1xf32>
    %21 = vector.broadcast %20 : vector<2x1xf32> to vector<2x16xf32>
    %22 = arith.subf %18, %21 : vector<2x16xf32>
    %23 = math.exp %22 : vector<2x16xf32>
    %cst_19 = arith.constant dense<0.000000e+00> : vector<2xf32>
    %24 = vector.multi_reduction <add>, %23, %cst_19 [1] : vector<2x16xf32> to vector<2xf32>
    %25 = vector.shape_cast %24 : vector<2xf32> to vector<2x1xf32>
    %26 = vector.broadcast %25 : vector<2x1xf32> to vector<2x16xf32>
    %27 = arith.divf %23, %26 : vector<2x16xf32>
    %28 = vector.shape_cast %27 : vector<2x16xf32> to vector<2x16x1xf32>
    %29 = arith.subf %0, %1 : vector<2x16x256xf32>
    %30 = vector.broadcast %28 : vector<2x16x1xf32> to vector<2x16x256xf32>
    %31 = arith.mulf %30, %29 : vector<2x16x256xf32>
    %32 = arith.addf %1, %31 : vector<2x16x256xf32>
    %c0_20 = arith.constant 0 : index
    %c0_21 = arith.constant 0 : index
    %c0_22 = arith.constant 0 : index
    %33 = vector.load %arg7[%c0_20, %c0_21, %c0_22] : memref<2x16x256xf32, #tpu.memory_space<vmem>>, vector<2x16x256xf32>
    tpu.vector_store %arg7[%c0_20, %c0_21, %c0_22], %32 {strides = array<i32>} : memref<2x16x256xf32, #tpu.memory_space<vmem>>, vector<2x16x256xf32>,
    return
  }
  func.func @transform_0(%arg0: i32) -> (i32, i32, i32) {
    %c0_i32 = arith.constant 0 : i32
    %c0_i32_0 = arith.constant 0 : i32
    %c0_i32_1 = arith.constant 0 : i32
    return %arg0, %c0_i32, %c0_i32_0 : i32, i32, i32
  }
  func.func @transform_1(%arg0: i32) -> (i32, i32, i32) {
    %c0_i32 = arith.constant 0 : i32
    %c0_i32_0 = arith.constant 0 : i32
    %c0_i32_1 = arith.constant 0 : i32
    return %arg0, %c0_i32, %c0_i32_0 : i32, i32, i32
  }
  func.func @transform_2(%arg0: i32) -> (i32, i32) {
    %c0_i32 = arith.constant 0 : i32
    %c0_i32_0 = arith.constant 0 : i32
    %c0_i32_1 = arith.constant 0 : i32
    return %c0_i32, %c0_i32_0 : i32, i32
  }
  func.func @transform_3(%arg0: i32) -> (i32, i32) {
    %c0_i32 = arith.constant 0 : i32
    %c0_i32_0 = arith.constant 0 : i32
    %c0_i32_1 = arith.constant 0 : i32
    return %c0_i32, %c0_i32_0 : i32, i32
  }
  func.func @transform_4(%arg0: i32) -> (i32, i32) {
    %c0_i32 = arith.constant 0 : i32
    %c0_i32_0 = arith.constant 0 : i32
    %c0_i32_1 = arith.constant 0 : i32
    return %c0_i32, %c0_i32_0 : i32, i32
  }
  func.func @transform_5(%arg0: i32) -> (i32, i32) {
    %c0_i32 = arith.constant 0 : i32
    %c0_i32_0 = arith.constant 0 : i32
    %c0_i32_1 = arith.constant 0 : i32
    return %c0_i32, %c0_i32_0 : i32, i32
  }
  func.func @transform_6(%arg0: i32) -> (i32, i32, i32) {
    %c0_i32 = arith.constant 0 : i32
    %c0_i32_0 = arith.constant 0 : i32
    %c0_i32_1 = arith.constant 0 : i32
    return %arg0, %c0_i32, %c0_i32_0 : i32, i32, i32
  }
}

</mosaic_0001>

<llo_original>
// kernel: tpu_custom_call.1
$region0: #{tpu_custom_call.1}
  #allocation0 [shape = 'u32[]', space=smem, size = 0x4, offset = 0x4, fixed_abs, tag = 'smem constant byte address 0x4 - core index']
  #allocation1 [shape = 'u32[72,128]{1,0:T(1,128)}', space=vmem, size = 0x9000, scoped, tag = 'internal scratch']
  %s0 = inlined_call_operand.hbm [shape: f32[4,16,256], index: 0, kind: input, shape index: {}]
  %s1 = inlined_call_operand.hbm [shape: f32[4,16,256], index: 1, kind: input, shape index: {}]
  %s2 = inlined_call_operand.vmem [shape: f32[16,8], index: 2, kind: input, shape index: {}]
  %s3 = inlined_call_operand.vmem [shape: f32[1,8], index: 3, kind: input, shape index: {}]
  %s4 = inlined_call_operand.vmem [shape: f32[1,8], index: 4, kind: input, shape index: {}]
  %s5 = inlined_call_operand.vmem [shape: f32[8,16], index: 5, kind: input, shape index: {}]
  %s6 = inlined_call_operand.hbm [shape: f32[4,16,256], index: 6, kind: output, shape index: {}]
  %s7 = sld [smem:[#allocation0]]
  $region65: #{tpu_custom_call.1} parent=0
    _
  %s9 = ssub.s32 1, %s7
  %s10 = scalar_select 0, %s9, %s7
  $region1: #{tpu_custom_call.1} parent=0
    #allocation2 [shape = 'u8[65536]{0}', space=vmem, size = 0x10000, scoped, tag = 'input window, operand 0']
    #allocation3 [shape = 's32[2]{0}', space=sflag, size = 0x8, scoped, tag = 'scoped memory for tpu_custom_call.1']
    #allocation4 [shape = 's32[2]{0}', space=sflag, size = 0x8, scoped, tag = 'scoped memory for tpu_custom_call.1']
    #allocation5 [shape = 'u8[65536]{0}', space=vmem, size = 0x10000, scoped, tag = 'input window, operand 1']
    #allocation6 [shape = 's32[2]{0}', space=sflag, size = 0x8, scoped, tag = 'scoped memory for tpu_custom_call.1']
    #allocation7 [shape = 'u8[65536]{0}', space=vmem, size = 0x10000, scoped, tag = 'output window, operand 0']
    %11 = vsyncpa [#allocation3], 0
    %s12 = scalar_lea.sflag [#allocation3], 1
    %13 = vsyncpa %s12, 0
    %14 = vsyncpa [#allocation6], 0
    %s15 = scalar_lea.sflag [#allocation6], 1
    %16 = vsyncpa %s15, 0
    %17 = vsyncpa [#allocation4], 0
    %s18 = scalar_lea.sflag [#allocation4], 1
    %19 = vsyncpa %s18, 0
    loop: start=0, step=1, limit=4
    $region2: #{tpu_custom_call.1} parent=1 // loop_pre_header
      _
    $region3: #{tpu_custom_call.1} parent=1 // loop_header
      %s21 = sphi 0, %s25
      %p22 = scmp.ge.s32.totalorder %s21, 4
      %s31 = sphi 0, %s33
      %s34 = sphi 0, %s31
      %s35 = sphi 0, %s34
      %s51 = sphi 0, %s35
      %s57 = sphi 0, %s59
      %s60 = sphi 0, %s57
      %s61 = sphi 0, %s60
      %s77 = sphi 0, %s61
      %s81 = sphi 0, %s81
      %s83 = sphi 0, %s81
      %s84 = sphi 0, %s83
      %s98 = sphi 0, %s84
      %s102 = sphi 0, %s102
      %s104 = sphi 0, %s102
      %s105 = sphi 0, %s104
      %s119 = sphi 0, %s105
      %s123 = sphi 0, %s123
      %s125 = sphi 0, %s123
      %s126 = sphi 0, %s125
      %s140 = sphi 0, %s126
      %s144 = sphi 0, %s144
      %s146 = sphi 0, %s144
      %s147 = sphi 0, %s146
      %s161 = sphi 0, %s147
      %s167 = sphi 0, %s169
      %s170 = sphi 0, %s167
      %s171 = sphi 0, %s170
      %s187 = sphi 0, %s171
    $region4: #{tpu_custom_call.1} parent=1 // loop_header_branch
      %24 = sbr.rel (%p22) target = $region8
    $region5: #{tpu_custom_call.1} parent=1 // loop_body
      %s26 = ssub.s32 %s21, 1
      %s27 = ssub.s32 %s21, 2
      %s28 = sadd.s32 %s21, 1
      %s29 = ssub.s32 %s21, %s28
      %p30 = scmp.eq.s32.totalorder %s29, 0
      %s32 = sadd.s32 %s31, 1
      %s33 = scalar_select %p30, %s31, %s32
      %p36 = pneg %p30
      %p37 = scmp.eq.s32.totalorder %s21, 1
      %p38 = por %p36, %p37
      %p39 = scmp.ne.s32.totalorder %s31, %s34
      %p40 = scmp.eq.s32.totalorder %s21, 0
      %p41 = por %p39, %p40
      %p42 = scmp.ne.s32.totalorder %s31, %s34
      %p43 = scmp.eq.s32.totalorder %s26, 1
      %p44 = por %p42, %p43
      %p45 = scmp.ne.s32.totalorder %s34, %s35
      %p46 = scmp.eq.s32.totalorder %s26, 0
      %p47 = por %p45, %p46
      %p48 = scmp.ne.s32.totalorder %s34, %s35
      %p49 = scmp.eq.s32.totalorder %s27, 1
      %p50 = por %p48, %p49
      %p52 = scmp.ne.s32.totalorder %s35, %s51
      %p53 = scmp.eq.s32.totalorder %s27, 0
      %p54 = por %p52, %p53
      %s55 = ssub.s32 %s21, %s28
      %p56 = scmp.eq.s32.totalorder %s55, 0
      %s58 = sadd.s32 %s57, 1
      %s59 = scalar_select %p56, %s57, %s58
      %p62 = pneg %p56
      %p63 = scmp.eq.s32.totalorder %s21, 1
      %p64 = por %p62, %p63
      %p65 = scmp.ne.s32.totalorder %s57, %s60
      %p66 = scmp.eq.s32.totalorder %s21, 0
      %p67 = por %p65, %p66
      %p68 = scmp.ne.s32.totalorder %s57, %s60
      %p69 = scmp.eq.s32.totalorder %s26, 1
      %p70 = por %p68, %p69
      %p71 = scmp.ne.s32.totalorder %s60, %s61
      %p72 = scmp.eq.s32.totalorder %s26, 0
      %p73 = por %p71, %p72
      %p74 = scmp.ne.s32.totalorder %s60, %s61
      %p75 = scmp.eq.s32.totalorder %s27, 1
      %p76 = por %p74, %p75
      %p78 = scmp.ne.s32.totalorder %s61, %s77
      %p79 = scmp.eq.s32.totalorder %s27, 0
      %p80 = por %p78, %p79
      %s82 = sadd.s32 %s81, 1
      %p85 = scmp.eq.s32.totalorder %s21, 1
      %p86 = scmp.ne.s32.totalorder %s81, %s83
      %p87 = scmp.eq.s32.totalorder %s21, 0
      %p88 = por %p86, %p87
      %p89 = scmp.ne.s32.totalorder %s81, %s83
      %p90 = scmp.eq.s32.totalorder %s26, 1
      %p91 = por %p89, %p90
      %p92 = scmp.ne.s32.totalorder %s83, %s84
      %p93 = scmp.eq.s32.totalorder %s26, 0
      %p94 = por %p92, %p93
      %p95 = scmp.ne.s32.totalorder %s83, %s84
      %p96 = scmp.eq.s32.totalorder %s27, 1
      %p97 = por %p95, %p96
      %p99 = scmp.ne.s32.totalorder %s84, %s98
      %p100 = scmp.eq.s32.totalorder %s27, 0
      %p101 = por %p99, %p100
      %s103 = sadd.s32 %s102, 1
      %p106 = scmp.eq.s32.totalorder %s21, 1
      %p107 = scmp.ne.s32.totalorder %s102, %s104
      %p108 = scmp.eq.s32.totalorder %s21, 0
      %p109 = por %p107, %p108
      %p110 = scmp.ne.s32.totalorder %s102, %s104
      %p111 = scmp.eq.s32.totalorder %s26, 1
      %p112 = por %p110, %p111
      %p113 = scmp.ne.s32.totalorder %s104, %s105
      %p114 = scmp.eq.s32.totalorder %s26, 0
      %p115 = por %p113, %p114
      %p116 = scmp.ne.s32.totalorder %s104, %s105
      %p117 = scmp.eq.s32.totalorder %s27, 1
      %p118 = por %p116, %p117
      %p120 = scmp.ne.s32.totalorder %s105, %s119
      %p121 = scmp.eq.s32.totalorder %s27, 0
      %p122 = por %p120, %p121
      %s124 = sadd.s32 %s123, 1
      %p127 = scmp.eq.s32.totalorder %s21, 1
      %p128 = scmp.ne.s32.totalorder %s123, %s125
      %p129 = scmp.eq.s32.totalorder %s21, 0
      %p130 = por %p128, %p129
      %p131 = scmp.ne.s32.totalorder %s123, %s125
      %p132 = scmp.eq.s32.totalorder %s26, 1
      %p133 = por %p131, %p132
      %p134 = scmp.ne.s32.totalorder %s125, %s126
      %p135 = scmp.eq.s32.totalorder %s26, 0
      %p136 = por %p134, %p135
      %p137 = scmp.ne.s32.totalorder %s125, %s126
      %p138 = scmp.eq.s32.totalorder %s27, 1
      %p139 = por %p137, %p138
      %p141 = scmp.ne.s32.totalorder %s126, %s140
      %p142 = scmp.eq.s32.totalorder %s27, 0
      %p143 = por %p141, %p142
      %s145 = sadd.s32 %s144, 1
      %p148 = scmp.eq.s32.totalorder %s21, 1
      %p149 = scmp.ne.s32.totalorder %s144, %s146
      %p150 = scmp.eq.s32.totalorder %s21, 0
      %p151 = por %p149, %p150
      %p152 = scmp.ne.s32.totalorder %s144, %s146
      %p153 = scmp.eq.s32.totalorder %s26, 1
      %p154 = por %p152, %p153
      %p155 = scmp.ne.s32.totalorder %s146, %s147
      %p156 = scmp.eq.s32.totalorder %s26, 0
      %p157 = por %p155, %p156
      %p158 = scmp.ne.s32.totalorder %s146, %s147
      %p159 = scmp.eq.s32.totalorder %s27, 1
      %p160 = por %p158, %p159
      %p162 = scmp.ne.s32.totalorder %s147, %s161
      %p163 = scmp.eq.s32.totalorder %s27, 0
      %p164 = por %p162, %p163
      %s165 = ssub.s32 %s21, %s28
      %p166 = scmp.eq.s32.totalorder %s165, 0
      %s168 = sadd.s32 %s167, 1
      %s169 = scalar_select %p166, %s167, %s168
      %p172 = pneg %p166
      %p173 = scmp.eq.s32.totalorder %s21, 1
      %p174 = por %p172, %p173
      %p175 = scmp.ne.s32.totalorder %s167, %s170
      %p176 = scmp.eq.s32.totalorder %s21, 0
      %p177 = por %p175, %p176
      %p178 = scmp.ne.s32.totalorder %s167, %s170
      %p179 = scmp.eq.s32.totalorder %s26, 1
      %p180 = por %p178, %p179
      %p181 = scmp.ne.s32.totalorder %s170, %s171
      %p182 = scmp.eq.s32.totalorder %s26, 0
      %p183 = por %p181, %p182
      %p184 = scmp.ne.s32.totalorder %s170, %s171
      %p185 = scmp.eq.s32.totalorder %s27, 1
      %p186 = por %p184, %p185
      %p188 = scmp.ne.s32.totalorder %s171, %s187
      %p189 = scmp.eq.s32.totalorder %s27, 0
      %p190 = por %p188, %p189
      %p191 = scmp.le.s32.totalorder 1, %s21
      %p192 = scmp.lt.s32.totalorder %s21, 3
      %p193 = pnand %p191, %p192
      %p194 = pneg %p193
      // Predicated region
      $region9: #{tpu_custom_call.1} parent=5 // pred_check
        _
      $region10: #{tpu_custom_call.1} parent=5 // pred_check_branch
        %196 = sbr.rel (%p193) target = $region12
      $region11: #{tpu_custom_call.1} parent=5 // pred_region
        %s197 = ssub.s32 %s21, 1
        // Predicated region
        $region13: #{tpu_custom_call.1} parent=11 // pred_check
          %p198 = pneg %p94
        $region14: #{tpu_custom_call.1} parent=11 // pred_check_branch
          %200 = sbr.rel (%p198) target = $region16
        $region15: #{tpu_custom_call.1} parent=11 // pred_region
          _
        $region16: #{tpu_custom_call.1} parent=11 // pred_fallthru
          _
        // Predicated region
        $region17: #{tpu_custom_call.1} parent=11 // pred_check
          %p201 = pneg %p115
        $region18: #{tpu_custom_call.1} parent=11 // pred_check_branch
          %203 = sbr.rel (%p201) target = $region20
        $region19: #{tpu_custom_call.1} parent=11 // pred_region
          _
        $region20: #{tpu_custom_call.1} parent=11 // pred_fallthru
          _
        // Predicated region
        $region21: #{tpu_custom_call.1} parent=11 // pred_check
          %p204 = pneg %p136
        $region22: #{tpu_custom_call.1} parent=11 // pred_check_branch
          %206 = sbr.rel (%p204) target = $region24
        $region23: #{tpu_custom_call.1} parent=11 // pred_region
          _
        $region24: #{tpu_custom_call.1} parent=11 // pred_fallthru
          _
        // Predicated region
        $region25: #{tpu_custom_call.1} parent=11 // pred_check
          %p207 = pneg %p157
        $region26: #{tpu_custom_call.1} parent=11 // pred_check_branch
          %209 = sbr.rel (%p207) target = $region28
        $region27: #{tpu_custom_call.1} parent=11 // pred_region
          _
        $region28: #{tpu_custom_call.1} parent=11 // pred_fallthru
          _
      $region12: #{tpu_custom_call.1} parent=5 // pred_fallthru
        _
      %p210 = scmp.lt.s32.totalorder %s21, 2
      // Predicated region
      $region29: #{tpu_custom_call.1} parent=5 // pred_check
        %p211 = pneg %p210
      $region30: #{tpu_custom_call.1} parent=5 // pred_check_branch
        %213 = sbr.rel (%p211) target = $region32
      $region31: #{tpu_custom_call.1} parent=5 // pred_region
        // Predicated region
        $region33: #{tpu_custom_call.1} parent=31 // pred_check
          %p214 = pneg %p41
        $region34: #{tpu_custom_call.1} parent=31 // pred_check_branch
          %216 = sbr.rel (%p214) target = $region36
        $region35: #{tpu_custom_call.1} parent=31 // pred_region
          %s217 = sand.u32 %s31, 1
          %s218 = scalar_lea.sflag [#allocation3], %s217
          %s219 = sand.u32 %s31, 1
          %s220 = smul.addr %s219, 64
          %s221 = scalar_lea.vmem [#allocation2], %s220
          %s222 = smul.u32 2, %s21
          %224 = vsyncadd %s218, 0
          %s225 = smul.addr %s222, 4
          %s226 = smul.addr %s225, 8
          %s227 = scalar_lea.hbm %s0, %s226
          %s228 = sshll.u32 %s227, 4
          %s229 = int_to_ptr.hbm [resolvable:$true] %s228
          %s230 = sshll.u32 %s221, 4
          %s231 = int_to_ptr.vmem [resolvable:$true] %s230
          %236 = dma.hbm_to_vmem [thread:$0]  %s229, 1024, %s231, %s218, 256, 256, 16
        $region36: #{tpu_custom_call.1} parent=31 // pred_fallthru
          _
        // Predicated region
        $region37: #{tpu_custom_call.1} parent=31 // pred_check
          %p237 = pneg %p67
        $region38: #{tpu_custom_call.1} parent=31 // pred_check_branch
          %239 = sbr.rel (%p237) target = $region40
        $region39: #{tpu_custom_call.1} parent=31 // pred_region
          %s240 = sand.u32 %s57, 1
          %s241 = scalar_lea.sflag [#allocation6], %s240
          %s242 = sand.u32 %s57, 1
          %s243 = smul.addr %s242, 64
          %s244 = scalar_lea.vmem [#allocation5], %s243
          %s245 = smul.u32 2, %s21
          %247 = vsyncadd %s241, 0
          %s248 = smul.addr %s245, 4
          %s249 = smul.addr %s248, 8
          %s250 = scalar_lea.hbm %s1, %s249
          %s251 = sshll.u32 %s250, 4
          %s252 = int_to_ptr.hbm [resolvable:$true] %s251
          %s253 = sshll.u32 %s244, 4
          %s254 = int_to_ptr.vmem [resolvable:$true] %s253
          %259 = dma.hbm_to_vmem [thread:$0]  %s252, 1024, %s254, %s241, 256, 256, 16
        $region40: #{tpu_custom_call.1} parent=31 // pred_fallthru
          _
      $region32: #{tpu_custom_call.1} parent=5 // pred_fallthru
        _
      %p260 = scmp.le.s32.totalorder 1, %s21
      %p261 = scmp.lt.s32.totalorder %s21, 3
      %p262 = pnand %p260, %p261
      %p263 = pneg %p262
      // Predicated region
      $region41: #{tpu_custom_call.1} parent=5 // pred_check
        _
      $region42: #{tpu_custom_call.1} parent=5 // pred_check_branch
        %265 = sbr.rel (%p262) target = $region44
      $region43: #{tpu_custom_call.1} parent=5 // pred_region
        %s266 = ssub.s32 %s21, 1
        %s267 = sand.u32 %s34, 1
        %s268 = scalar_lea.sflag [#allocation3], %s267
        %s269 = sand.u32 %s34, 1
        %s270 = smul.addr %s269, 64
        %s271 = scalar_lea.vmem [#allocation2], %s270
        // Predicated region
        $region45: #{tpu_custom_call.1} parent=43 // pred_check
          %p272 = pneg %p47
        $region46: #{tpu_custom_call.1} parent=43 // pred_check_branch
          %274 = sbr.rel (%p272) target = $region48
        $region47: #{tpu_custom_call.1} parent=43 // pred_region
          %276 = dma.done %s268, 1024
        $region48: #{tpu_custom_call.1} parent=43 // pred_fallthru
          _
        %s277 = sand.u32 %s60, 1
        %s278 = scalar_lea.sflag [#allocation6], %s277
        %s279 = sand.u32 %s60, 1
        %s280 = smul.addr %s279, 64
        %s281 = scalar_lea.vmem [#allocation5], %s280
        // Predicated region
        $region49: #{tpu_custom_call.1} parent=43 // pred_check
          %p282 = pneg %p73
        $region50: #{tpu_custom_call.1} parent=43 // pred_check_branch
          %284 = sbr.rel (%p282) target = $region52
        $region51: #{tpu_custom_call.1} parent=43 // pred_region
          %286 = dma.done %s278, 1024
        $region52: #{tpu_custom_call.1} parent=43 // pred_fallthru
          _
        %s287 = sand.u32 %s34, 1
        %s288 = scalar_lea.sflag [#allocation3], %s287
        %s289 = sand.u32 %s34, 1
        %s290 = smul.addr %s289, 64
        %s291 = scalar_lea.vmem [#allocation2], %s290
        %p292 = pneg %p47
        %p293 = pneg %p44
        %s294 = sand.u32 %s60, 1
        %s295 = scalar_lea.sflag [#allocation6], %s294
        %s296 = sand.u32 %s60, 1
        %s297 = smul.addr %s296, 64
        %s298 = scalar_lea.vmem [#allocation5], %s297
        %p299 = pneg %p73
        %p300 = pneg %p70
        %p301 = pneg %p94
        %p302 = pneg %p91
        %p303 = pneg %p115
        %p304 = pneg %p112
        %p305 = pneg %p136
        %p306 = pneg %p133
        %p307 = pneg %p157
        %p308 = pneg %p154
        %p309 = pneg %p183
        %p310 = pneg %p180
        %s311 = sand.u32 %s170, 1
        %s312 = scalar_lea.sflag [#allocation4], %s311
        %s313 = sand.u32 %s170, 1
        %s314 = smul.addr %s313, 64
        %s315 = scalar_lea.vmem [#allocation7], %s314
        %s316 = smul.u32 2, %s26
        %s317 = smul.u32 2, %s26
        %s318 = smul.u32 2, %s26
        %v319 = vld [vmem:[%s271] sm:$0xff]
        %v320 = vld [vmem:[%s271 + $0x8] sm:$0xff]
        %v321 = vld [vmem:[%s271 + $0x10] sm:$0xff]
        %v322 = vld [vmem:[%s271 + $0x18] sm:$0xff]
        %v323 = vld [vmem:[%s271 + $0x20] sm:$0xff]
        %v324 = vld [vmem:[%s271 + $0x28] sm:$0xff]
        %v325 = vld [vmem:[%s271 + $0x30] sm:$0xff]
        %v326 = vld [vmem:[%s271 + $0x38] sm:$0xff]
        %v327 = vld [vmem:[%s281] sm:$0xff]
        %v328 = vld [vmem:[%s281 + $0x8] sm:$0xff]
        %v329 = vld [vmem:[%s281 + $0x10] sm:$0xff]
        %v330 = vld [vmem:[%s281 + $0x18] sm:$0xff]
        %v331 = vld [vmem:[%s281 + $0x20] sm:$0xff]
        %v332 = vld [vmem:[%s281 + $0x28] sm:$0xff]
        %v333 = vld [vmem:[%s281 + $0x30] sm:$0xff]
        %v334 = vld [vmem:[%s281 + $0x38] sm:$0xff]
        %v335 = vadd.f32 %v319, %v320
        %336 = vadd.xlane.f32.xlu0 %v335
        %v337 = vpop.xlane.xlu0 %336
        %v338 = vadd.f32 %v321, %v322
        %339 = vadd.xlane.f32.xlu0 %v338
        %v340 = vpop.xlane.xlu0 %339
        %v341 = vadd.f32 %v323, %v324
        %342 = vadd.xlane.f32.xlu0 %v341
        %v343 = vpop.xlane.xlu0 %342
        %v344 = vadd.f32 %v325, %v326
        %345 = vadd.xlane.f32.xlu0 %v344
        %v346 = vpop.xlane.xlu0 %345
        %v347 = vadd.f32 %v327, %v328
        %348 = vadd.xlane.f32.xlu0 %v347
        %v349 = vpop.xlane.xlu0 %348
        %v350 = vadd.f32 %v329, %v330
        %351 = vadd.xlane.f32.xlu0 %v350
        %v352 = vpop.xlane.xlu0 %351
        %v353 = vadd.f32 %v331, %v332
        %354 = vadd.xlane.f32.xlu0 %v353
        %v355 = vpop.xlane.xlu0 %354
        %v356 = vadd.f32 %v333, %v334
        %357 = vadd.xlane.f32.xlu0 %v356
        %v358 = vpop.xlane.xlu0 %357
        %v359 = vadd.f32 %v337, %v349
        %v360 = vadd.f32 %v340, %v352
        %v361 = vadd.f32 %v343, %v355
        %v362 = vadd.f32 %v346, %v358
        %v363 = vmul.f32 %v359, 0.00390625
        %v364 = vmul.f32 %v360, 0.00390625
        %v365 = vmul.f32 %v361, 0.00390625
        %v366 = vmul.f32 %v362, 0.00390625
        %v367 = vld [vmem:[%s2] sm:$0xff]
        %v368 = vld [vmem:[%s2 + $0x8] sm:$0xff]
        %v373 = vlaneseq
        %v374 = vand.u32 %v373, 127
        %v375 = vperm.slane %v363, %v374
        %v376 = vadd.s32 %v374, 4294967288
        %v377 = vperm.slane %v364, %v376
        %vm378 = vcmask 130112
        %v379 = vsel %vm378, %v377, %v375
        %v380 = vperm.slane %v365, %v374
        %v381 = vperm.slane %v366, %v376
        %v382 = vsel %vm378, %v381, %v380
        %vm383 = vcmask 1041409
        %v384 = vsel %vm383, %v382, %v379
        %vm385 = vcmask 130048
        %v386 = vsel %vm385, %v384, 0
        %388 = vmatpush.msra.mxu0 0.0
        %389 = vmatpush.msra.mxu0 0.0
        %390 = vmatpush.msra.mxu0 0.0
        %391 = vmatpush.msra.mxu0 0.0
        %392 = vmatpush.msra.mxu0 0.0
        %393 = vmatpush.msra.mxu0 0.0
        %394 = vmatpush.msra.mxu0 0.0
        %395 = vmatpush.msra.mxu0 0.0
        %396 = vmatpush.msra.mxu0 0.0
        %397 = vmatpush.msra.mxu0 0.0
        %398 = vmatpush.msra.mxu0 0.0
        %399 = vmatpush.msra.mxu0 0.0
        %400 = vmatpush.msra.mxu0 0.0
        %401 = vmatpush.msra.mxu0 0.0
        %v402 = vand.u32 %v368, 4294901760
        %403 = vmatpush.msra.mxu0 %v402
        %v404 = vand.u32 %v367, 4294901760
        %405 = vmatpush.msra.mxu0 %v404
        %v406 = vand.u32 %v386, 4294901760
        %v407 = vsub.f32 %v386, %v406
        %v408 = vand.u32 %v407, 4294901760
        %v409 = vsub.f32 %v407, %v408
        %v410 = vand.u32 %v409, 4294901760
        %411 = vmatmul.f32.gmra.mxu0 %v410
        %v412 = vpop.f32.mrf.mxu0
        %v413 = vadd.f32 0.0, %v412
        %414 = vdwg.mxu0
        %415 = vmatpush.msra.mxu0 0.0
        %416 = vmatpush.msra.mxu0 0.0
        %417 = vmatpush.msra.mxu0 0.0
        %418 = vmatpush.msra.mxu0 0.0
        %419 = vmatpush.msra.mxu0 0.0
        %420 = vmatpush.msra.mxu0 0.0
        %421 = vmatpush.msra.mxu0 0.0
        %422 = vmatpush.msra.mxu0 0.0
        %423 = vmatpush.msra.mxu0 0.0
        %424 = vmatpush.msra.mxu0 0.0
        %425 = vmatpush.msra.mxu0 0.0
        %426 = vmatpush.msra.mxu0 0.0
        %427 = vmatpush.msra.mxu0 0.0
        %428 = vmatpush.msra.mxu0 0.0
        %v429 = vand.u32 %v368, 4294901760
        %v430 = vsub.f32 %v368, %v429
        %v431 = vand.u32 %v430, 4294901760
        %v432 = vsub.f32 %v430, %v431
        %v433 = vand.u32 %v432, 4294901760
        %434 = vmatpush.msra.mxu0 %v433
        %v435 = vand.u32 %v367, 4294901760
        %v436 = vsub.f32 %v367, %v435
        %v437 = vand.u32 %v436, 4294901760
        %v438 = vsub.f32 %v436, %v437
        %v439 = vand.u32 %v438, 4294901760
        %440 = vmatpush.msra.mxu0 %v439
        %v441 = vand.u32 %v386, 4294901760
        %442 = vmatmul.f32.gmra.mxu0 %v441
        %v443 = vpop.f32.mrf.mxu0
        %v444 = vadd.f32 %v413, %v443
        %445 = vdwg.mxu0
        %446 = vmatpush.msra.mxu0 0.0
        %447 = vmatpush.msra.mxu0 0.0
        %448 = vmatpush.msra.mxu0 0.0
        %449 = vmatpush.msra.mxu0 0.0
        %450 = vmatpush.msra.mxu0 0.0
        %451 = vmatpush.msra.mxu0 0.0
        %452 = vmatpush.msra.mxu0 0.0
        %453 = vmatpush.msra.mxu0 0.0
        %454 = vmatpush.msra.mxu0 0.0
        %455 = vmatpush.msra.mxu0 0.0
        %456 = vmatpush.msra.mxu0 0.0
        %457 = vmatpush.msra.mxu0 0.0
        %458 = vmatpush.msra.mxu0 0.0
        %459 = vmatpush.msra.mxu0 0.0
        %v460 = vand.u32 %v368, 4294901760
        %v461 = vsub.f32 %v368, %v460
        %462 = vmatpush.msra.mxu0 %v461
        %v463 = vand.u32 %v367, 4294901760
        %v464 = vsub.f32 %v367, %v463
        %465 = vmatpush.msra.mxu0 %v464
        %v466 = vand.u32 %v386, 4294901760
        %v467 = vsub.f32 %v386, %v466
        %468 = vmatmul.f32.gmra.mxu0 %v467
        %v469 = vpop.f32.mrf.mxu0
        %v470 = vadd.f32 %v444, %v469
        %471 = vdwg.mxu0
        %472 = vmatpush.msra.mxu0 0.0
        %473 = vmatpush.msra.mxu0 0.0
        %474 = vmatpush.msra.mxu0 0.0
        %475 = vmatpush.msra.mxu0 0.0
        %476 = vmatpush.msra.mxu0 0.0
        %477 = vmatpush.msra.mxu0 0.0
        %478 = vmatpush.msra.mxu0 0.0
        %479 = vmatpush.msra.mxu0 0.0
        %480 = vmatpush.msra.mxu0 0.0
        %481 = vmatpush.msra.mxu0 0.0
        %482 = vmatpush.msra.mxu0 0.0
        %483 = vmatpush.msra.mxu0 0.0
        %484 = vmatpush.msra.mxu0 0.0
        %485 = vmatpush.msra.mxu0 0.0
        %v486 = vand.u32 %v368, 4294901760
        %487 = vmatpush.msra.mxu0 %v486
        %v488 = vand.u32 %v367, 4294901760
        %489 = vmatpush.msra.mxu0 %v488
        %v490 = vand.u32 %v386, 4294901760
        %v491 = vsub.f32 %v386, %v490
        %v492 = vand.u32 %v491, 4294901760
        %493 = vmatmul.f32.gmra.mxu0 %v492
        %v494 = vpop.f32.mrf.mxu0
        %v495 = vadd.f32 %v470, %v494
        %496 = vdwg.mxu0
        %497 = vmatpush.msra.mxu0 0.0
        %498 = vmatpush.msra.mxu0 0.0
        %499 = vmatpush.msra.mxu0 0.0
        %500 = vmatpush.msra.mxu0 0.0
        %501 = vmatpush.msra.mxu0 0.0
        %502 = vmatpush.msra.mxu0 0.0
        %503 = vmatpush.msra.mxu0 0.0
        %504 = vmatpush.msra.mxu0 0.0
        %505 = vmatpush.msra.mxu0 0.0
        %506 = vmatpush.msra.mxu0 0.0
        %507 = vmatpush.msra.mxu0 0.0
        %508 = vmatpush.msra.mxu0 0.0
        %509 = vmatpush.msra.mxu0 0.0
        %510 = vmatpush.msra.mxu0 0.0
        %v511 = vand.u32 %v368, 4294901760
        %v512 = vsub.f32 %v368, %v511
        %v513 = vand.u32 %v512, 4294901760
        %514 = vmatpush.msra.mxu0 %v513
        %v515 = vand.u32 %v367, 4294901760
        %v516 = vsub.f32 %v367, %v515
        %v517 = vand.u32 %v516, 4294901760
        %518 = vmatpush.msra.mxu0 %v517
        %v519 = vand.u32 %v386, 4294901760
        %520 = vmatmul.f32.gmra.mxu0 %v519
        %v521 = vpop.f32.mrf.mxu0
        %v522 = vadd.f32 %v495, %v521
        %523 = vdwg.mxu0
        %524 = vmatpush.msra.mxu0 0.0
        %525 = vmatpush.msra.mxu0 0.0
        %526 = vmatpush.msra.mxu0 0.0
        %527 = vmatpush.msra.mxu0 0.0
        %528 = vmatpush.msra.mxu0 0.0
        %529 = vmatpush.msra.mxu0 0.0
        %530 = vmatpush.msra.mxu0 0.0
        %531 = vmatpush.msra.mxu0 0.0
        %532 = vmatpush.msra.mxu0 0.0
        %533 = vmatpush.msra.mxu0 0.0
        %534 = vmatpush.msra.mxu0 0.0
        %535 = vmatpush.msra.mxu0 0.0
        %536 = vmatpush.msra.mxu0 0.0
        %537 = vmatpush.msra.mxu0 0.0
        %v538 = vand.u32 %v368, 4294901760
        %539 = vmatpush.msra.mxu0 %v538
        %v540 = vand.u32 %v367, 4294901760
        %541 = vmatpush.msra.mxu0 %v540
        %v542 = vand.u32 %v386, 4294901760
        %543 = vmatmul.f32.gmra.mxu0 %v542
        %v544 = vpop.f32.mrf.mxu0
        %v545 = vadd.f32 %v522, %v544
        %546 = vdwg.mxu0
        %v547 = vld [vmem:[%s3] sm:$0x1]
        %v549 = vperm.slane %v547, 0
        %v551 = vmul.f32 %v545, %v549
        %v552 = vld [vmem:[%s4] sm:$0x1]
        %v554 = vperm.slane %v552, 0
        %v556 = vadd.f32 %v551, %v554
        %v557 = vmax.f32 %v556, 0.0
        %v558 = vld [vmem:[%s5] sm:$0xff]
        %vm559 = vcmask 64512
        %v561 = vsel %vm559, %v557, 0
        %563 = vmatpush.msra.mxu0 0.0
        %564 = vmatpush.msra.mxu0 0.0
        %565 = vmatpush.msra.mxu0 0.0
        %566 = vmatpush.msra.mxu0 0.0
        %567 = vmatpush.msra.mxu0 0.0
        %568 = vmatpush.msra.mxu0 0.0
        %569 = vmatpush.msra.mxu0 0.0
        %570 = vmatpush.msra.mxu0 0.0
        %571 = vmatpush.msra.mxu0 0.0
        %572 = vmatpush.msra.mxu0 0.0
        %573 = vmatpush.msra.mxu0 0.0
        %574 = vmatpush.msra.mxu0 0.0
        %575 = vmatpush.msra.mxu0 0.0
        %576 = vmatpush.msra.mxu0 0.0
        %577 = vmatpush.msra.mxu0 0.0
        %v578 = vand.u32 %v558, 4294901760
        %579 = vmatpush.msra.mxu0 %v578
        %v580 = vand.u32 %v561, 4294901760
        %v581 = vsub.f32 %v561, %v580
        %v582 = vand.u32 %v581, 4294901760
        %v583 = vsub.f32 %v581, %v582
        %v584 = vand.u32 %v583, 4294901760
        %585 = vmatmul.f32.gmra.mxu0 %v584
        %v586 = vpop.f32.mrf.mxu0
        %v587 = vadd.f32 0.0, %v586
        %588 = vdwg.mxu0
        %589 = vmatpush.msra.mxu0 0.0
        %590 = vmatpush.msra.mxu0 0.0
        %591 = vmatpush.msra.mxu0 0.0
        %592 = vmatpush.msra.mxu0 0.0
        %593 = vmatpush.msra.mxu0 0.0
        %594 = vmatpush.msra.mxu0 0.0
        %595 = vmatpush.msra.mxu0 0.0
        %596 = vmatpush.msra.mxu0 0.0
        %597 = vmatpush.msra.mxu0 0.0
        %598 = vmatpush.msra.mxu0 0.0
        %599 = vmatpush.msra.mxu0 0.0
        %600 = vmatpush.msra.mxu0 0.0
        %601 = vmatpush.msra.mxu0 0.0
        %602 = vmatpush.msra.mxu0 0.0
        %603 = vmatpush.msra.mxu0 0.0
        %v604 = vand.u32 %v558, 4294901760
        %v605 = vsub.f32 %v558, %v604
        %v606 = vand.u32 %v605, 4294901760
        %v607 = vsub.f32 %v605, %v606
        %v608 = vand.u32 %v607, 4294901760
        %609 = vmatpush.msra.mxu0 %v608
        %v610 = vand.u32 %v561, 4294901760
        %611 = vmatmul.f32.gmra.mxu0 %v610
        %v612 = vpop.f32.mrf.mxu0
        %v613 = vadd.f32 %v587, %v612
        %614 = vdwg.mxu0
        %615 = vmatpush.msra.mxu0 0.0
        %616 = vmatpush.msra.mxu0 0.0
        %617 = vmatpush.msra.mxu0 0.0
        %618 = vmatpush.msra.mxu0 0.0
        %619 = vmatpush.msra.mxu0 0.0
        %620 = vmatpush.msra.mxu0 0.0
        %621 = vmatpush.msra.mxu0 0.0
        %622 = vmatpush.msra.mxu0 0.0
        %623 = vmatpush.msra.mxu0 0.0
        %624 = vmatpush.msra.mxu0 0.0
        %625 = vmatpush.msra.mxu0 0.0
        %626 = vmatpush.msra.mxu0 0.0
        %627 = vmatpush.msra.mxu0 0.0
        %628 = vmatpush.msra.mxu0 0.0
        %629 = vmatpush.msra.mxu0 0.0
        %v630 = vand.u32 %v558, 4294901760
        %v631 = vsub.f32 %v558, %v630
        %632 = vmatpush.msra.mxu0 %v631
        %v633 = vand.u32 %v561, 4294901760
        %v634 = vsub.f32 %v561, %v633
        %635 = vmatmul.f32.gmra.mxu0 %v634
        %v636 = vpop.f32.mrf.mxu0
        %v637 = vadd.f32 %v613, %v636
        %638 = vdwg.mxu0
        %639 = vmatpush.msra.mxu0 0.0
        %640 = vmatpush.msra.mxu0 0.0
        %641 = vmatpush.msra.mxu0 0.0
        %642 = vmatpush.msra.mxu0 0.0
        %643 = vmatpush.msra.mxu0 0.0
        %644 = vmatpush.msra.mxu0 0.0
        %645 = vmatpush.msra.mxu0 0.0
        %646 = vmatpush.msra.mxu0 0.0
        %647 = vmatpush.msra.mxu0 0.0
        %648 = vmatpush.msra.mxu0 0.0
        %649 = vmatpush.msra.mxu0 0.0
        %650 = vmatpush.msra.mxu0 0.0
        %651 = vmatpush.msra.mxu0 0.0
        %652 = vmatpush.msra.mxu0 0.0
        %653 = vmatpush.msra.mxu0 0.0
        %v654 = vand.u32 %v558, 4294901760
        %655 = vmatpush.msra.mxu0 %v654
        %v656 = vand.u32 %v561, 4294901760
        %v657 = vsub.f32 %v561, %v656
        %v658 = vand.u32 %v657, 4294901760
        %659 = vmatmul.f32.gmra.mxu0 %v658
        %v660 = vpop.f32.mrf.mxu0
        %v661 = vadd.f32 %v637, %v660
        %662 = vdwg.mxu0
        %663 = vmatpush.msra.mxu0 0.0
        %664 = vmatpush.msra.mxu0 0.0
        %665 = vmatpush.msra.mxu0 0.0
        %666 = vmatpush.msra.mxu0 0.0
        %667 = vmatpush.msra.mxu0 0.0
        %668 = vmatpush.msra.mxu0 0.0
        %669 = vmatpush.msra.mxu0 0.0
        %670 = vmatpush.msra.mxu0 0.0
        %671 = vmatpush.msra.mxu0 0.0
        %672 = vmatpush.msra.mxu0 0.0
        %673 = vmatpush.msra.mxu0 0.0
        %674 = vmatpush.msra.mxu0 0.0
        %675 = vmatpush.msra.mxu0 0.0
        %676 = vmatpush.msra.mxu0 0.0
        %677 = vmatpush.msra.mxu0 0.0
        %v678 = vand.u32 %v558, 4294901760
        %v679 = vsub.f32 %v558, %v678
        %v680 = vand.u32 %v679, 4294901760
        %681 = vmatpush.msra.mxu0 %v680
        %v682 = vand.u32 %v561, 4294901760
        %683 = vmatmul.f32.gmra.mxu0 %v682
        %v684 = vpop.f32.mrf.mxu0
        %v685 = vadd.f32 %v661, %v684
        %686 = vdwg.mxu0
        %687 = vmatpush.msra.mxu0 0.0
        %688 = vmatpush.msra.mxu0 0.0
        %689 = vmatpush.msra.mxu0 0.0
        %690 = vmatpush.msra.mxu0 0.0
        %691 = vmatpush.msra.mxu0 0.0
        %692 = vmatpush.msra.mxu0 0.0
        %693 = vmatpush.msra.mxu0 0.0
        %694 = vmatpush.msra.mxu0 0.0
        %695 = vmatpush.msra.mxu0 0.0
        %696 = vmatpush.msra.mxu0 0.0
        %697 = vmatpush.msra.mxu0 0.0
        %698 = vmatpush.msra.mxu0 0.0
        %699 = vmatpush.msra.mxu0 0.0
        %700 = vmatpush.msra.mxu0 0.0
        %701 = vmatpush.msra.mxu0 0.0
        %v702 = vand.u32 %v558, 4294901760
        %703 = vmatpush.msra.mxu0 %v702
        %v704 = vand.u32 %v561, 4294901760
        %705 = vmatmul.f32.gmra.mxu0 %v704
        %v706 = vpop.f32.mrf.mxu0
        %v707 = vadd.f32 %v685, %v706
        %708 = vdwg.mxu0
        %vm709 = vcmask 123904
        %v710 = vsel %vm709, %v707, -inf
        %711 = vmax.xlane.f32.xlu0 %v710
        %v712 = vpop.xlane.xlu0 %711
        %v713 = vsub.f32 %v707, %v712
        %v714 = vmul.f32 %v713, 1.442695
        %v715 = vpow.pop %v714
        %v716 = vsel %vm709, %v715, 0.0
        %717 = vadd.xlane.f32.xlu0 %v716
        %v718 = vpop.xlane.xlu0 %717
        %v719 = vrcp.pop %v718
        %v720 = vmul.f32 %v718, %v719
        %v721 = vsub.f32 1.0, %v720
        %v722 = vmul.f32 %v719, %v721
        %v723 = vadd.f32 %v719, %v722
        %vm724 = vweird.f32 %v718
        %vm725 = vweird.f32 %v719
        %vm726 = vmor %vm724, %vm725
        %v727 = vsel %vm726, %v719, %v723
        %v728 = vand.u32 2147483647, %v718
        %vm729 = vcmp.eq.f32.partialorder %v728, 8.507059e+37
        %v730 = vand.u32 %v718, 2147483648
        %v731 = vor.u32 1.1754944e-38, %v730
        %v732 = vsel %vm729, %v731, %v727
        %v733 = vmul.f32 %v715, %v732
        %v734 = vperm.slane %v733, 0
        %v735 = vlaneseq
        %v736 = vshrl.u32 %v735, 7
        %738 = vset.pattern.permute.xlu0 %v736
        %739 = vperm.xlu0 %738, %v734
        %v740 = vpop.permute.xlu0 %739
        %v741 = vlaneseq
        %v742 = vshrl.u32 %v741, 7
        %v743 = vadd.s32 %v742, 8
        %744 = vset.pattern.permute.xlu0 %v743
        %745 = vperm.xlu0 %744, %v734
        %v746 = vpop.permute.xlu0 %745
        %v747 = vperm.slane %v733, 1
        %v748 = vlaneseq
        %v749 = vshrl.u32 %v748, 7
        %751 = vset.pattern.permute.xlu0 %v749
        %752 = vperm.xlu0 %751, %v747
        %v753 = vpop.permute.xlu0 %752
        %v754 = vlaneseq
        %v755 = vshrl.u32 %v754, 7
        %v756 = vadd.s32 %v755, 8
        %757 = vset.pattern.permute.xlu0 %v756
        %758 = vperm.xlu0 %757, %v747
        %v759 = vpop.permute.xlu0 %758
        %v760 = vsub.f32 %v319, %v327
        %v761 = vsub.f32 %v320, %v328
        %v762 = vsub.f32 %v321, %v329
        %v763 = vsub.f32 %v322, %v330
        %v764 = vsub.f32 %v323, %v331
        %v765 = vsub.f32 %v324, %v332
        %v766 = vsub.f32 %v325, %v333
        %v767 = vsub.f32 %v326, %v334
        %v768 = vmul.f32 %v740, %v760
        %v769 = vmul.f32 %v740, %v761
        %v770 = vmul.f32 %v746, %v762
        %v771 = vmul.f32 %v746, %v763
        %v772 = vmul.f32 %v753, %v764
        %v773 = vmul.f32 %v753, %v765
        %v774 = vmul.f32 %v759, %v766
        %v775 = vmul.f32 %v759, %v767
        %v776 = vadd.f32 %v327, %v768
        %v777 = vadd.f32 %v328, %v769
        %v778 = vadd.f32 %v329, %v770
        %v779 = vadd.f32 %v330, %v771
        %v780 = vadd.f32 %v331, %v772
        %v781 = vadd.f32 %v332, %v773
        %v782 = vadd.f32 %v333, %v774
        %v783 = vadd.f32 %v334, %v775
        %784 = vst [vmem:[%s315] sm:$0xff] %v776
        %785 = vst [vmem:[%s315 + $0x8] sm:$0xff] %v777
        %786 = vst [vmem:[%s315 + $0x10] sm:$0xff] %v778
        %787 = vst [vmem:[%s315 + $0x18] sm:$0xff] %v779
        %788 = vst [vmem:[%s315 + $0x20] sm:$0xff] %v780
        %789 = vst [vmem:[%s315 + $0x28] sm:$0xff] %v781
        %790 = vst [vmem:[%s315 + $0x30] sm:$0xff] %v782
        %791 = vst [vmem:[%s315 + $0x38] sm:$0xff] %v783
        %s792 = sand.u32 %s170, 1
        %s793 = scalar_lea.sflag [#allocation4], %s792
        %s794 = sand.u32 %s170, 1
        %s795 = smul.addr %s794, 64
        %s796 = scalar_lea.vmem [#allocation7], %s795
        // Predicated region
        $region53: #{tpu_custom_call.1} parent=43 // pred_check
          %p797 = pneg %p180
        $region54: #{tpu_custom_call.1} parent=43 // pred_check_branch
          %799 = sbr.rel (%p797) target = $region56
        $region55: #{tpu_custom_call.1} parent=43 // pred_region
          %s800 = smul.u32 2, %s26
          %802 = vsyncadd %s793, 0
          %s803 = smul.addr %s800, 4
          %s804 = smul.addr %s803, 8
          %s805 = scalar_lea.hbm %s6, %s804
          %s806 = sshll.u32 %s796, 4
          %s807 = int_to_ptr.vmem [resolvable:$true] %s806
          %s808 = sshll.u32 %s805, 4
          %s809 = int_to_ptr.hbm [resolvable:$true] %s808
          %814 = dma.vmem_to_hbm [thread:$0]  %s807, 1024, %s809, %s793, 256, 256, 16
        $region56: #{tpu_custom_call.1} parent=43 // pred_fallthru
          _
      $region44: #{tpu_custom_call.1} parent=5 // pred_fallthru
        _
      %p815 = scmp.le.s32.totalorder 2, %s21
      // Predicated region
      $region57: #{tpu_custom_call.1} parent=5 // pred_check
        %p816 = pneg %p815
      $region58: #{tpu_custom_call.1} parent=5 // pred_check_branch
        %818 = sbr.rel (%p816) target = $region60
      $region59: #{tpu_custom_call.1} parent=5 // pred_region
        %s819 = ssub.s32 %s21, 2
        // Predicated region
        $region61: #{tpu_custom_call.1} parent=59 // pred_check
          %p820 = pneg %p186
        $region62: #{tpu_custom_call.1} parent=59 // pred_check_branch
          %822 = sbr.rel (%p820) target = $region64
        $region63: #{tpu_custom_call.1} parent=59 // pred_region
          %s823 = sand.u32 %s171, 1
          %s824 = scalar_lea.sflag [#allocation4], %s823
          %s825 = sand.u32 %s171, 1
          %s826 = smul.addr %s825, 64
          %s827 = scalar_lea.vmem [#allocation7], %s826
          %829 = dma.done %s824, 1024
        $region64: #{tpu_custom_call.1} parent=59 // pred_fallthru
          _
      $region60: #{tpu_custom_call.1} parent=5 // pred_fallthru
        _
    $region6: #{tpu_custom_call.1} parent=1 // loop_footer
      %s25 = sadd.s32 1, %s21
    $region7: #{tpu_custom_call.1} parent=1 // loop_footer_branch
      %20 = sbr.rel target = $region3
    $region8: #{tpu_custom_call.1} parent=1 // loop_exit
      _
    %830 = vsyncpa [#allocation3], 1
    %s831 = scalar_lea.sflag [#allocation3], 1
    %832 = vsyncpa %s831, 1
    %833 = vsyncpa [#allocation6], 1
    %s834 = scalar_lea.sflag [#allocation6], 1
    %835 = vsyncpa %s834, 1
    %836 = vsyncpa [#allocation4], 1
    %s837 = scalar_lea.sflag [#allocation4], 1
    %838 = vsyncpa %s837, 1

</llo_original>
